<compile_context>
chip_gen: v7x
topology: tpu7x:2x2x1
jax: 0.10.0
libtpu: 0.0.40
codegen_flags: <defaults>
</compile_context>

<pallas_src>
import jax
import jax.numpy as jnp
from jax.experimental import pallas as pl
from jax.experimental.pallas import tpu as pltpu

HIDDEN = 256


def _round_up(x, m):
    return ((x + m - 1) // m) * m


# ---------------------------------------------------------------------------
# Kernel
# ---------------------------------------------------------------------------
def critic_kernel(s_ref, a_ref,
                  w14_ref, b14_ref,
                  w2_ref, b2_ref, w5_ref, b5_ref,
                  w36_ref, b36_ref,
                  out_ref,
                  sa_ref):
    s_cols = s_ref.shape[1]

    # Assemble the fused layer-1 LHS in VMEM scratch (no wrapper concat).
    # One dot with K = state_cols + action_cols feeds BOTH heads' first
    # layers (N = 512), i.e. ~half the layer-1 MXU pushes of a K-split pair.
    # (f32 scratch; the bf16 cast happens once, right before the dot.)
    sa_ref[:, :s_cols] = s_ref[...]
    sa_ref[:, s_cols:] = a_ref[...]
    sa = sa_ref[...].astype(jnp.bfloat16)

    h14 = (jnp.dot(sa, w14_ref[...], preferred_element_type=jnp.float32)
           + b14_ref[...])
    h14 = jnp.maximum(h14, 0.0)

    h1 = h14[:, :HIDDEN]      # Q1 head
    h4 = h14[:, HIDDEN:]      # Q2 head

    # Hidden 256x256 layers: bf16 inputs, f32 accumulation on the MXU.
    h2 = jnp.dot(h1.astype(jnp.bfloat16), w2_ref[...],
                 preferred_element_type=jnp.float32) + b2_ref[...]
    h2 = jnp.maximum(h2, 0.0)
    h5 = jnp.dot(h4.astype(jnp.bfloat16), w5_ref[...],
                 preferred_element_type=jnp.float32) + b5_ref[...]
    h5 = jnp.maximum(h5, 0.0)

    # Final 256 -> 1 projections: N=1 matmuls waste a full MXU pass, so do
    # them on the VPU (mul) + XLU (lane reduce) in f32.
    w3_row = w36_ref[0:1, :]                                   # (1, 256)
    w6_row = w36_ref[1:2, :]                                   # (1, 256)
    q1 = jnp.sum(h2 * w3_row, axis=-1, keepdims=True)          # (tile_b, 1)
    q2 = jnp.sum(h5 * w6_row, axis=-1, keepdims=True)          # (tile_b, 1)

    # Lane-dense (tile_b, 2) output: col 0 = q1, col 1 = q2.
    col = jax.lax.broadcasted_iota(jnp.int32, out_ref.shape, 1)
    out_ref[...] = jnp.where(col == 0, q1, q2) + b36_ref[...]


# ---------------------------------------------------------------------------
# Parameter preparation (done once, outside the hot path)
# ---------------------------------------------------------------------------
def init_linear(key, fan_in, fan_out):
    """PyTorch-style nn.Linear init; weight stored as [in, out]."""
    kw, kb = jax.random.split(key)
    bound = 1.0 / jnp.sqrt(jnp.float32(fan_in))
    w = jax.random.uniform(kw, (fan_in, fan_out), jnp.float32, -bound, bound)
    b = jax.random.uniform(kb, (1, fan_out), jnp.float32, -bound, bound)
    return w, b


def make_params(state_dim, action_dim, max_agents=3, hidden=HIDDEN, seed=0):
    in_dim = state_dim + action_dim + 8 + max_agents
    keys = jax.random.split(jax.random.PRNGKey(seed), 6)
    w1, b1 = init_linear(keys[0], in_dim, hidden)
    w2, b2 = init_linear(keys[1], hidden, hidden)
    w3, b3 = init_linear(keys[2], hidden, 1)
    w4, b4 = init_linear(keys[3], in_dim, hidden)
    w5, b5 = init_linear(keys[4], hidden, hidden)
    w6, b6 = init_linear(keys[5], hidden, 1)
    return (w1, b1, w2, b2, w3, b3, w4, b4, w5, b5, w6, b6)


def prepare_params(params):
    """Fuse / stack / cast the per-layer params into the kernel layout.

    - w1|w4 fused to a single (in_dim, 512) bf16 matrix (kept UNSPLIT: the
      kernel builds the concatenated LHS in VMEM scratch)
    - w2, w5 cast to bf16 (MXU-native); biases stay f32
    - w3|w6 stacked as a (2, 256) f32 row matrix for the VPU projection
    - b3|b6 stacked as (1, 2)
    """
    (w1, b1, w2, b2, w3, b3, w4, b4, w5, b5, w6, b6) = params
    w14 = jnp.concatenate([w1, w4], axis=1).astype(jnp.bfloat16)  # (in_dim, 512)
    b14 = jnp.concatenate([b1, b4], axis=1)                       # (1, 512) f32
    w36 = jnp.concatenate([w3, w6], axis=1).T                     # (2, 256) f32
    b36 = jnp.concatenate([b3, b6], axis=1)                       # (1, 2)   f32
    return (w14, b14,
            w2.astype(jnp.bfloat16), b2,
            w5.astype(jnp.bfloat16), b5,
            w36, b36)


# ---------------------------------------------------------------------------
# Forward wrapper
# ---------------------------------------------------------------------------
def critic_forward(state, action, kernel_params, *, tile_b=None):
    """Equivalent of Critic.forward(state, action) -> (q1, q2)."""
    B = state.shape[0]
    (w14, b14, w2, b2, w5, b5, w36, b36) = kernel_params
    in_dim = w14.shape[0]
    s_cols = state.shape[1]
    a_cols = action.shape[1]
    assert s_cols + a_cols == in_dim

    # Tile heuristic:
    #  * B <= 8: one full-extent block (block dim == array dim, no padding).
    #  * B >  8: >= 2 grid steps (feeds both v7x TensorCores via "parallel"),
    #    capped at 1024 rows so f32 intermediates stay ~8 MiB per step —
    #    under the scoped-VMEM default on v5e (16 MiB) / v6e / v7x (32 MiB).
    # No wrapper-side jnp.pad: the ragged last block uses Pallas' masked
    # partial-block handling (garbage tail rows are never stored to HBM).
    if tile_b is None:
        if B <= 8:
            tile_b = B
        else:
            tile_b = min(1024, _round_up(pl.cdiv(B, 2), 8))
    num_tiles = pl.cdiv(B, tile_b)

    def resident(x):  # weight/bias: full-array block, DMA'd once, stays in VMEM
        return pl.BlockSpec(x.shape, lambda i: (0, 0))

    in_specs = [
        pl.BlockSpec((tile_b, s_cols), lambda i: (i, 0)),   # state (streamed)
        pl.BlockSpec((tile_b, a_cols), lambda i: (i, 0)),   # action (streamed)
        resident(w14), resident(b14),
        resident(w2), resident(b2),
        resident(w5), resident(b5),
        resident(w36), resident(b36),
    ]
    out_spec = pl.BlockSpec((tile_b, 2), lambda i: (i, 0))

    flops = 2 * B * (in_dim * 2 * HIDDEN + 2 * HIDDEN * HIDDEN + 2 * HIDDEN)
    bytes_accessed = (B * (in_dim + 2) * 4
                      + sum(int(x.size) * x.dtype.itemsize for x in kernel_params))

    out = pl.pallas_call(
        critic_kernel,
        out_shape=jax.ShapeDtypeStruct((B, 2), jnp.float32),
        grid=(num_tiles,),
        in_specs=in_specs,
        out_specs=out_spec,
        scratch_shapes=[pltpu.VMEM((tile_b, in_dim), jnp.float32)],
        compiler_params=pltpu.CompilerParams(
            dimension_semantics=("parallel",)),
        cost_estimate=pl.CostEstimate(
            flops=flops, transcendentals=0, bytes_accessed=bytes_accessed),
    )(state, action, w14, b14, w2, b2, w5, b5, w36, b36)

    return out[:, 0:1], out[:, 1:2]


# ---------------------------------------------------------------------------
# References
# ---------------------------------------------------------------------------
def critic_reference(state, action, params):
    """Pure-f32 reference matching the PyTorch module."""
    sa = jnp.concatenate([state, action], axis=1)
    (w1, b1, w2, b2, w3, b3, w4, b4, w5, b5, w6, b6) = params
    h = jnp.maximum(sa @ w1 + b1, 0.0)
    h = jnp.maximum(h @ w2 + b2, 0.0)
    q1 = h @ w3 + b3
    g = jnp.maximum(sa @ w4 + b4, 0.0)
    g = jnp.maximum(g @ w5 + b5, 0.0)
    q2 = g @ w6 + b6
    return q1, q2


def critic_reference_bf16(state, action, params):
    """Reference mimicking the kernel's bf16-input / f32-accumulate matmuls."""
    (w1, b1, w2, b2, w3, b3, w4, b4, w5, b5, w6, b6) = params
    bf = jnp.bfloat16
    sa = jnp.concatenate([state, action], axis=1).astype(bf)

    def lin(x, w, b):
        return jnp.dot(x, w.astype(bf), preferred_element_type=jnp.float32) + b

    h = jnp.maximum(lin(sa, w1, b1), 0.0)
    h = jnp.maximum(lin(h.astype(bf), w2, b2), 0.0)
    q1 = h @ w3 + b3                       # final projection is f32 in-kernel
    g = jnp.maximum(lin(sa, w4, b4), 0.0)
    g = jnp.maximum(lin(g.astype(bf), w5, b5), 0.0)
    q2 = g @ w6 + b6
    return q1, q2


# ---------------------------------------------------------------------------
if __name__ == "__main__":
    # state_dim=16, action_dim=4, max_agents=3 -> l1 input = 16+4+8+3 = 31.
    # As in the module's usage, the "state" tensor carries the extra
    # 8+max_agents features so cat([state, action], 1) has 31 columns.
    state_dim, action_dim, max_agents = 16, 4, 3
    batch = 2

    params = make_params(state_dim, action_dim, max_agents, seed=0)
    kparams = prepare_params(params)

    key = jax.random.PRNGKey(0)
    ks, ka = jax.random.split(key)
    state = jax.random.normal(ks, (batch, state_dim + 8 + max_agents), jnp.float32)
    action = jax.random.normal(ka, (batch, action_dim), jnp.float32)

    q1, q2 = critic_forward(state, action, kparams)
    q1 = jax.block_until_ready(q1)
    q2 = jax.block_until_ready(q2)

    # Tight check against a reference applying the same bf16 casts.
    r1, r2 = critic_reference_bf16(state, action, params)
    assert jnp.allclose(q1, r1, atol=5e-3, rtol=5e-3), (q1, r1)
    assert jnp.allclose(q2, r2, atol=5e-3, rtol=5e-3), (q2, r2)

    # Loose check against the exact f32 module semantics (bf16 rounding noise).
    f1, f2 = critic_reference(state, action, params)
    assert jnp.allclose(q1, f1, atol=5e-2, rtol=5e-2), (q1, f1)
    assert jnp.allclose(q2, f2, atol=5e-2, rtol=5e-2), (q2, f2)

    print("KERNEL_OK")
</pallas_src>

<mosaic_0001>
module attributes {stable_mosaic.version = 11 : i64} {
  func.func @critic_kernel(%arg0: i32, %arg1: memref<2x27xf32, #tpu.memory_space<vmem>>, %arg2: memref<2x4xf32, #tpu.memory_space<vmem>>, %arg3: memref<31x512xbf16, #tpu.memory_space<vmem>>, %arg4: memref<1x512xf32, #tpu.memory_space<vmem>>, %arg5: memref<256x256xbf16, #tpu.memory_space<vmem>>, %arg6: memref<1x256xf32, #tpu.memory_space<vmem>>, %arg7: memref<256x256xbf16, #tpu.memory_space<vmem>>, %arg8: memref<1x256xf32, #tpu.memory_space<vmem>>, %arg9: memref<2x256xf32, #tpu.memory_space<vmem>>, %arg10: memref<1x2xf32, #tpu.memory_space<vmem>>, %arg11: memref<2x2xf32, #tpu.memory_space<vmem>>, %arg12: memref<2x31xf32, #tpu.memory_space<vmem>>) attributes {dimension_semantics = [#tpu.dimension_semantics<parallel>], iteration_bounds = array<i64: 1>, scalar_prefetch = 0 : i64, scratch_operands = 1 : i64, tpu.core_type = #tpu.core_type<tc>, window_params = [{transform_indices = @transform_0, window_bounds = array<i64: 2, 27>}, {transform_indices = @transform_1, window_bounds = array<i64: 2, 4>}, {pipeline_mode = #tpu.pipeline_mode<synchronous>, transform_indices = @transform_2, window_bounds = array<i64: 31, 512>}, {pipeline_mode = #tpu.pipeline_mode<synchronous>, transform_indices = @transform_3, window_bounds = array<i64: 1, 512>}, {pipeline_mode = #tpu.pipeline_mode<synchronous>, transform_indices = @transform_4, window_bounds = array<i64: 256, 256>}, {pipeline_mode = #tpu.pipeline_mode<synchronous>, transform_indices = @transform_5, window_bounds = array<i64: 1, 256>}, {pipeline_mode = #tpu.pipeline_mode<synchronous>, transform_indices = @transform_6, window_bounds = array<i64: 256, 256>}, {pipeline_mode = #tpu.pipeline_mode<synchronous>, transform_indices = @transform_7, window_bounds = array<i64: 1, 256>}, {pipeline_mode = #tpu.pipeline_mode<synchronous>, transform_indices = @transform_8, window_bounds = array<i64: 2, 256>}, {pipeline_mode = #tpu.pipeline_mode<synchronous>, transform_indices = @transform_9, window_bounds = array<i64: 1, 2>}, {transform_indices = @transform_10, window_bounds = array<i64: 2, 2>}]} {
    %c0 = arith.constant 0 : index
    %c0_0 = arith.constant 0 : index
    %0 = vector.load %arg1[%c0, %c0_0] : memref<2x27xf32, #tpu.memory_space<vmem>>, vector<2x27xf32>
    %c0_1 = arith.constant 0 : index
    %c0_2 = arith.constant 0 : index
    %1 = vector.load %arg12[%c0_1, %c0_2] : memref<2x31xf32, #tpu.memory_space<vmem>>, vector<2x27xf32>
    tpu.vector_store %arg12[%c0_1, %c0_2], %0 {strides = array<i32>} : memref<2x31xf32, #tpu.memory_space<vmem>>, vector<2x27xf32>,
    %c0_3 = arith.constant 0 : index
    %c0_4 = arith.constant 0 : index
    %2 = vector.load %arg2[%c0_3, %c0_4] : memref<2x4xf32, #tpu.memory_space<vmem>>, vector<2x4xf32>
    %c0_5 = arith.constant 0 : index
    %c27 = arith.constant 27 : index
    %3 = vector.load %arg12[%c0_5, %c27] : memref<2x31xf32, #tpu.memory_space<vmem>>, vector<2x4xf32>
    tpu.vector_store %arg12[%c0_5, %c27], %2 {strides = array<i32>} : memref<2x31xf32, #tpu.memory_space<vmem>>, vector<2x4xf32>,
    %c0_6 = arith.constant 0 : index
    %c0_7 = arith.constant 0 : index
    %4 = vector.load %arg12[%c0_6, %c0_7] : memref<2x31xf32, #tpu.memory_space<vmem>>, vector<2x31xf32>
    %5 = arith.truncf %4 : vector<2x31xf32> to vector<2x31xbf16>
    %c0_8 = arith.constant 0 : index
    %c0_9 = arith.constant 0 : index
    %6 = vector.load %arg3[%c0_8, %c0_9] : memref<31x512xbf16, #tpu.memory_space<vmem>>, vector<31x512xbf16>
    %cst = arith.constant dense<0.000000e+00> : vector<2x512xf32>
    %7 = tpu.matmul %5, %6, %cst {dimension_numbers = #tpu.dot_dimension_numbers<[1], [0], [0], [1], [0, 0, 1, 1], [], []>} : vector<2x31xbf16>, vector<31x512xbf16>, vector<2x512xf32> -> vector<2x512xf32>
    %c0_10 = arith.constant 0 : index
    %c0_11 = arith.constant 0 : index
    %8 = vector.load %arg4[%c0_10, %c0_11] : memref<1x512xf32, #tpu.memory_space<vmem>>, vector<1x512xf32>
    %9 = vector.broadcast %8 : vector<1x512xf32> to vector<2x512xf32>
    %10 = arith.addf %7, %9 : vector<2x512xf32>
    %cst_12 = arith.constant 0.000000e+00 : f32
    %11 = vector.broadcast %cst_12 : f32 to vector<2x512xf32>
    %12 = arith.maximumf %10, %11 : vector<2x512xf32>
    %13 = vector.extract_strided_slice %12 {offsets = [0, 0], sizes = [2, 256], strides = [1, 1]} : vector<2x512xf32> to vector<2x256xf32>
    %14 = vector.extract_strided_slice %12 {offsets = [0, 256], sizes = [2, 256], strides = [1, 1]} : vector<2x512xf32> to vector<2x256xf32>
    %15 = arith.truncf %13 : vector<2x256xf32> to vector<2x256xbf16>
    %c0_13 = arith.constant 0 : index
    %c0_14 = arith.constant 0 : index
    %16 = vector.load %arg5[%c0_13, %c0_14] : memref<256x256xbf16, #tpu.memory_space<vmem>>, vector<256x256xbf16>
    %cst_15 = arith.constant dense<0.000000e+00> : vector<2x256xf32>
    %17 = tpu.matmul %15, %16, %cst_15 {dimension_numbers = #tpu.dot_dimension_numbers<[1], [0], [0], [1], [0, 0, 1, 1], [], []>} : vector<2x256xbf16>, vector<256x256xbf16>, vector<2x256xf32> -> vector<2x256xf32>
    %c0_16 = arith.constant 0 : index
    %c0_17 = arith.constant 0 : index
    %18 = vector.load %arg6[%c0_16, %c0_17] : memref<1x256xf32, #tpu.memory_space<vmem>>, vector<1x256xf32>
    %19 = vector.broadcast %18 : vector<1x256xf32> to vector<2x256xf32>
    %20 = arith.addf %17, %19 : vector<2x256xf32>
    %cst_18 = arith.constant 0.000000e+00 : f32
    %21 = vector.broadcast %cst_18 : f32 to vector<2x256xf32>
    %22 = arith.maximumf %20, %21 : vector<2x256xf32>
    %23 = arith.truncf %14 : vector<2x256xf32> to vector<2x256xbf16>
    %c0_19 = arith.constant 0 : index
    %c0_20 = arith.constant 0 : index
    %24 = vector.load %arg7[%c0_19, %c0_20] : memref<256x256xbf16, #tpu.memory_space<vmem>>, vector<256x256xbf16>
    %cst_21 = arith.constant dense<0.000000e+00> : vector<2x256xf32>
    %25 = tpu.matmul %23, %24, %cst_21 {dimension_numbers = #tpu.dot_dimension_numbers<[1], [0], [0], [1], [0, 0, 1, 1], [], []>} : vector<2x256xbf16>, vector<256x256xbf16>, vector<2x256xf32> -> vector<2x256xf32>
    %c0_22 = arith.constant 0 : index
    %c0_23 = arith.constant 0 : index
    %26 = vector.load %arg8[%c0_22, %c0_23] : memref<1x256xf32, #tpu.memory_space<vmem>>, vector<1x256xf32>
    %27 = vector.broadcast %26 : vector<1x256xf32> to vector<2x256xf32>
    %28 = arith.addf %25, %27 : vector<2x256xf32>
    %cst_24 = arith.constant 0.000000e+00 : f32
    %29 = vector.broadcast %cst_24 : f32 to vector<2x256xf32>
    %30 = arith.maximumf %28, %29 : vector<2x256xf32>
    %c0_25 = arith.constant 0 : index
    %c0_26 = arith.constant 0 : index
    %31 = vector.load %arg9[%c0_25, %c0_26] : memref<2x256xf32, #tpu.memory_space<vmem>>, vector<1x256xf32>
    %c1 = arith.constant 1 : index
    %c0_27 = arith.constant 0 : index
    %32 = vector.load %arg9[%c1, %c0_27] : memref<2x256xf32, #tpu.memory_space<vmem>>, vector<1x256xf32>
    %33 = vector.broadcast %31 : vector<1x256xf32> to vector<2x256xf32>
    %34 = arith.mulf %22, %33 : vector<2x256xf32>
    %cst_28 = arith.constant dense<0.000000e+00> : vector<2xf32>
    %35 = vector.multi_reduction <add>, %34, %cst_28 [1] : vector<2x256xf32> to vector<2xf32>
    %36 = vector.shape_cast %35 : vector<2xf32> to vector<2x1xf32>
    %37 = vector.broadcast %32 : vector<1x256xf32> to vector<2x256xf32>
    %38 = arith.mulf %30, %37 : vector<2x256xf32>
    %cst_29 = arith.constant dense<0.000000e+00> : vector<2xf32>
    %39 = vector.multi_reduction <add>, %38, %cst_29 [1] : vector<2x256xf32> to vector<2xf32>
    %40 = vector.shape_cast %39 : vector<2xf32> to vector<2x1xf32>
    %41 = tpu.iota {dimensions = array<i32: 1>} : vector<2x2xi32>
    %c0_i32 = arith.constant 0 : i32
    %42 = vector.broadcast %c0_i32 : i32 to vector<2x2xi32>
    %43 = arith.cmpi eq, %41, %42 : vector<2x2xi32>
    %44 = vector.shape_cast %36 : vector<2x1xf32> to vector<2x1xf32>
    %45 = vector.broadcast %44 : vector<2x1xf32> to vector<2x2xf32>
    %46 = vector.shape_cast %40 : vector<2x1xf32> to vector<2x1xf32>
    %47 = vector.broadcast %46 : vector<2x1xf32> to vector<2x2xf32>
    %48 = arith.select %43, %45, %47 : vector<2x2xi1>, vector<2x2xf32>
    %c0_30 = arith.constant 0 : index
    %c0_31 = arith.constant 0 : index
    %49 = vector.load %arg10[%c0_30, %c0_31] : memref<1x2xf32, #tpu.memory_space<vmem>>, vector<1x2xf32>
    %50 = vector.broadcast %49 : vector<1x2xf32> to vector<2x2xf32>
    %51 = arith.addf %48, %50 : vector<2x2xf32>
    %c0_32 = arith.constant 0 : index
    %c0_33 = arith.constant 0 : index
    %52 = vector.load %arg11[%c0_32, %c0_33] : memref<2x2xf32, #tpu.memory_space<vmem>>, vector<2x2xf32>
    tpu.vector_store %arg11[%c0_32, %c0_33], %51 {strides = array<i32>} : memref<2x2xf32, #tpu.memory_space<vmem>>, vector<2x2xf32>,
    return
  }
  func.func @transform_0(%arg0: i32) -> (i32, i32) {
    %c0_i32 = arith.constant 0 : i32
    %c0_i32_0 = arith.constant 0 : i32
    return %arg0, %c0_i32 : i32, i32
  }
  func.func @transform_1(%arg0: i32) -> (i32, i32) {
    %c0_i32 = arith.constant 0 : i32
    %c0_i32_0 = arith.constant 0 : i32
    return %arg0, %c0_i32 : i32, i32
  }
  func.func @transform_2(%arg0: i32) -> (i32, i32) {
    %c0_i32 = arith.constant 0 : i32
    %c0_i32_0 = arith.constant 0 : i32
    %c0_i32_1 = arith.constant 0 : i32
    return %c0_i32, %c0_i32_0 : i32, i32
  }
  func.func @transform_3(%arg0: i32) -> (i32, i32) {
    %c0_i32 = arith.constant 0 : i32
    %c0_i32_0 = arith.constant 0 : i32
    %c0_i32_1 = arith.constant 0 : i32
    return %c0_i32, %c0_i32_0 : i32, i32
  }
  func.func @transform_4(%arg0: i32) -> (i32, i32) {
    %c0_i32 = arith.constant 0 : i32
    %c0_i32_0 = arith.constant 0 : i32
    %c0_i32_1 = arith.constant 0 : i32
    return %c0_i32, %c0_i32_0 : i32, i32
  }
  func.func @transform_5(%arg0: i32) -> (i32, i32) {
    %c0_i32 = arith.constant 0 : i32
    %c0_i32_0 = arith.constant 0 : i32
    %c0_i32_1 = arith.constant 0 : i32
    return %c0_i32, %c0_i32_0 : i32, i32
  }
  func.func @transform_6(%arg0: i32) -> (i32, i32) {
    %c0_i32 = arith.constant 0 : i32
    %c0_i32_0 = arith.constant 0 : i32
    %c0_i32_1 = arith.constant 0 : i32
    return %c0_i32, %c0_i32_0 : i32, i32
  }
  func.func @transform_7(%arg0: i32) -> (i32, i32) {
    %c0_i32 = arith.constant 0 : i32
    %c0_i32_0 = arith.constant 0 : i32
    %c0_i32_1 = arith.constant 0 : i32
    return %c0_i32, %c0_i32_0 : i32, i32
  }
  func.func @transform_8(%arg0: i32) -> (i32, i32) {
    %c0_i32 = arith.constant 0 : i32
    %c0_i32_0 = arith.constant 0 : i32
    %c0_i32_1 = arith.constant 0 : i32
    return %c0_i32, %c0_i32_0 : i32, i32
  }
  func.func @transform_9(%arg0: i32) -> (i32, i32) {
    %c0_i32 = arith.constant 0 : i32
    %c0_i32_0 = arith.constant 0 : i32
    %c0_i32_1 = arith.constant 0 : i32
    return %c0_i32, %c0_i32_0 : i32, i32
  }
  func.func @transform_10(%arg0: i32) -> (i32, i32) {
    %c0_i32 = arith.constant 0 : i32
    %c0_i32_0 = arith.constant 0 : i32
    return %arg0, %c0_i32 : i32, i32
  }
}

</mosaic_0001>

<llo_original>
// kernel: tpu_custom_call.1
$region0: #{tpu_custom_call.1}
  #allocation0 [shape = 'u32[]', space=smem, size = 0x4, offset = 0x4, fixed_abs, tag = 'smem constant byte address 0x4 - core index']
  #allocation1 [shape = 'u32[144,128]{1,0:T(1,128)}', space=vmem, size = 0x12000, scoped, tag = 'internal scratch']
  #allocation2 [shape = 'f32[2,31]{1,0:T(2,128)}', space=vmem, size = 0x400, scoped, tag = 'scratch operand']
  %s0 = inlined_call_operand.hbm [shape: f32[2,27], index: 0, kind: input, shape index: {}]
  %s1 = inlined_call_operand.vmem [shape: f32[2,4], index: 1, kind: input, shape index: {}]
  %s2 = inlined_call_operand.hbm [shape: bf16[31,512], index: 2, kind: input, shape index: {}]
  %s3 = inlined_call_operand.vmem [shape: f32[1,512], index: 3, kind: input, shape index: {}]
  %s4 = inlined_call_operand.hbm [shape: bf16[256,256], index: 4, kind: input, shape index: {}]
  %s5 = inlined_call_operand.vmem [shape: f32[1,256], index: 5, kind: input, shape index: {}]
  %s6 = inlined_call_operand.hbm [shape: bf16[256,256], index: 6, kind: input, shape index: {}]
  %s7 = inlined_call_operand.vmem [shape: f32[1,256], index: 7, kind: input, shape index: {}]
  %s8 = inlined_call_operand.vmem [shape: f32[2,256], index: 8, kind: input, shape index: {}]
  %s9 = inlined_call_operand.vmem [shape: f32[1,2], index: 9, kind: input, shape index: {}]
  %s10 = inlined_call_operand.hbm [shape: f32[2,2], index: 10, kind: output, shape index: {}]
  %s11 = sld [smem:[#allocation0]]
  $region66: #{tpu_custom_call.1} parent=0
    _
  %s13 = ssub.s32 1, %s11
  %s14 = scalar_select 0, %s13, %s11
  $region1: #{tpu_custom_call.1} parent=0
    #allocation3 [shape = 'u8[1024]{0}', space=vmem, size = 0x400, scoped, tag = 'input window, operand 0, single buffered']
    #allocation4 [shape = 's32[1]{0}', space=sflag, size = 0x4, scoped, tag = 'scoped memory for tpu_custom_call.1']
    #allocation5 [shape = 's32[1]{0}', space=sflag, size = 0x4, scoped, tag = 'scoped memory for tpu_custom_call.1']
    #allocation6 [shape = 'u8[32768]{0}', space=vmem, size = 0x8000, scoped, tag = 'input window, operand 2, single buffered']
    #allocation7 [shape = 's32[1]{0}', space=sflag, size = 0x4, scoped, tag = 'scoped memory for tpu_custom_call.1']
    #allocation8 [shape = 'u8[131072]{0}', space=vmem, size = 0x20000, scoped, tag = 'input window, operand 4, single buffered']
    #allocation9 [shape = 'u8[131072]{0}', space=vmem, size = 0x20000, scoped, tag = 'input window, operand 6, single buffered']
    #allocation10 [shape = 's32[1]{0}', space=sflag, size = 0x4, scoped, tag = 'scoped memory for tpu_custom_call.1']
    #allocation11 [shape = 'u8[1024]{0}', space=vmem, size = 0x400, scoped, tag = 'output window, operand 0, single buffered']
    %15 = vsyncpa [#allocation4], 0
    %16 = vsyncpa [#allocation7], 0
    %17 = vsyncpa [#allocation10], 0
    %18 = vsyncpa [#allocation5], 0
    // Predicated region
    $region2: #{tpu_custom_call.1} parent=1 // pred_check
      _
    $region3: #{tpu_custom_call.1} parent=1 // pred_check_branch
      %20 = sbr.rel (0) target = $region5
    $region4: #{tpu_custom_call.1} parent=1 // pred_region
      %s22 = ssub.s32 32, 32
      %23 = vsyncadd [#allocation4], %s22
      %s25 = sshll.u32 [#allocation3], 4
      %s26 = int_to_ptr.vmem [resolvable:$true] %s25
      %28 = dma.hbm_to_vmem [thread:$0]  %s0, 32, %s26, [#allocation4]
    $region5: #{tpu_custom_call.1} parent=1 // pred_fallthru
      _
    // Predicated region
    $region6: #{tpu_custom_call.1} parent=1 // pred_check
      _
    $region7: #{tpu_custom_call.1} parent=1 // pred_check_branch
      %30 = sbr.rel (0) target = $region9
    $region8: #{tpu_custom_call.1} parent=1 // pred_region
      _
    $region9: #{tpu_custom_call.1} parent=1 // pred_fallthru
      _
    // Predicated region
    $region10: #{tpu_custom_call.1} parent=1 // pred_check
      _
    $region11: #{tpu_custom_call.1} parent=1 // pred_check_branch
      %32 = sbr.rel (0) target = $region13
    $region12: #{tpu_custom_call.1} parent=1 // pred_region
      %s34 = ssub.s32 1024, 1024
      %35 = vsyncadd [#allocation7], %s34
      %s36 = sshll.u32 [#allocation6], 4
      %s37 = int_to_ptr.vmem [resolvable:$true] %s36
      %42 = dma.hbm_to_vmem [thread:$0]  %s2, 1024, %s37, [#allocation7], 256, 256, 16
    $region13: #{tpu_custom_call.1} parent=1 // pred_fallthru
      _
    // Predicated region
    $region14: #{tpu_custom_call.1} parent=1 // pred_check
      _
    $region15: #{tpu_custom_call.1} parent=1 // pred_check_branch
      %44 = sbr.rel (0) target = $region17
    $region16: #{tpu_custom_call.1} parent=1 // pred_region
      _
    $region17: #{tpu_custom_call.1} parent=1 // pred_fallthru
      _
    // Predicated region
    $region18: #{tpu_custom_call.1} parent=1 // pred_check
      _
    $region19: #{tpu_custom_call.1} parent=1 // pred_check_branch
      %46 = sbr.rel (0) target = $region21
    $region20: #{tpu_custom_call.1} parent=1 // pred_region
      %s48 = ssub.s32 4096, 4096
      %49 = vsyncadd [#allocation7], %s48
      %s50 = sshll.u32 [#allocation8], 4
      %s51 = int_to_ptr.vmem [resolvable:$true] %s50
      %56 = dma.hbm_to_vmem [thread:$0]  %s4, 4096, %s51, [#allocation7], 128, 128, 8
    $region21: #{tpu_custom_call.1} parent=1 // pred_fallthru
      _
    // Predicated region
    $region22: #{tpu_custom_call.1} parent=1 // pred_check
      _
    $region23: #{tpu_custom_call.1} parent=1 // pred_check_branch
      %58 = sbr.rel (0) target = $region25
    $region24: #{tpu_custom_call.1} parent=1 // pred_region
      _
    $region25: #{tpu_custom_call.1} parent=1 // pred_fallthru
      _
    // Predicated region
    $region26: #{tpu_custom_call.1} parent=1 // pred_check
      _
    $region27: #{tpu_custom_call.1} parent=1 // pred_check_branch
      %60 = sbr.rel (0) target = $region29
    $region28: #{tpu_custom_call.1} parent=1 // pred_region
      %s62 = ssub.s32 4096, 4096
      %63 = vsyncadd [#allocation10], %s62
      %s64 = sshll.u32 [#allocation9], 4
      %s65 = int_to_ptr.vmem [resolvable:$true] %s64
      %70 = dma.hbm_to_vmem [thread:$0]  %s6, 4096, %s65, [#allocation10], 128, 128, 8
    $region29: #{tpu_custom_call.1} parent=1 // pred_fallthru
      _
    // Predicated region
    $region30: #{tpu_custom_call.1} parent=1 // pred_check
      _
    $region31: #{tpu_custom_call.1} parent=1 // pred_check_branch
      %72 = sbr.rel (0) target = $region33
    $region32: #{tpu_custom_call.1} parent=1 // pred_region
      _
    $region33: #{tpu_custom_call.1} parent=1 // pred_fallthru
      _
    // Predicated region
    $region34: #{tpu_custom_call.1} parent=1 // pred_check
      _
    $region35: #{tpu_custom_call.1} parent=1 // pred_check_branch
      %74 = sbr.rel (0) target = $region37
    $region36: #{tpu_custom_call.1} parent=1 // pred_region
      _
    $region37: #{tpu_custom_call.1} parent=1 // pred_fallthru
      _
    // Predicated region
    $region38: #{tpu_custom_call.1} parent=1 // pred_check
      _
    $region39: #{tpu_custom_call.1} parent=1 // pred_check_branch
      %76 = sbr.rel (0) target = $region41
    $region40: #{tpu_custom_call.1} parent=1 // pred_region
      _
    $region41: #{tpu_custom_call.1} parent=1 // pred_fallthru
      _
    // Predicated region
    $region42: #{tpu_custom_call.1} parent=1 // pred_check
      _
    $region43: #{tpu_custom_call.1} parent=1 // pred_check_branch
      %78 = sbr.rel (0) target = $region45
    $region44: #{tpu_custom_call.1} parent=1 // pred_region
      %79 = dma.done [#allocation4], 32
    $region45: #{tpu_custom_call.1} parent=1 // pred_fallthru
      _
    // Predicated region
    $region46: #{tpu_custom_call.1} parent=1 // pred_check
      _
    $region47: #{tpu_custom_call.1} parent=1 // pred_check_branch
      %81 = sbr.rel (0) target = $region49
    $region48: #{tpu_custom_call.1} parent=1 // pred_region
      %82 = dma.done [#allocation7], 1024
    $region49: #{tpu_custom_call.1} parent=1 // pred_fallthru
      _
    // Predicated region
    $region50: #{tpu_custom_call.1} parent=1 // pred_check
      _
    $region51: #{tpu_custom_call.1} parent=1 // pred_check_branch
      %84 = sbr.rel (0) target = $region53
    $region52: #{tpu_custom_call.1} parent=1 // pred_region
      %85 = dma.done [#allocation7], 4096
    $region53: #{tpu_custom_call.1} parent=1 // pred_fallthru
      _
    // Predicated region
    $region54: #{tpu_custom_call.1} parent=1 // pred_check
      _
    $region55: #{tpu_custom_call.1} parent=1 // pred_check_branch
      %87 = sbr.rel (0) target = $region57
    $region56: #{tpu_custom_call.1} parent=1 // pred_region
      %88 = dma.done [#allocation10], 4096
    $region57: #{tpu_custom_call.1} parent=1 // pred_fallthru
      _
    %v90 = vld [vmem:[#allocation3] sm:$0x3]
    %vm91 = vcmask 214016
    %92 = vst.msk [vmem:[#allocation2] sm:$0x3] %vm91, %v90
    %v93 = vld [vmem:[%s1] sm:$0x3]
    %95 = vrot.lane.b32.xlu0 %v93, 27
    %v96 = vpop.permute.xlu0 %95
    %vm98 = vcmask 247000
    %99 = vst.msk [vmem:[#allocation2] sm:$0x3] %vm98, %v96
    %v100 = vld [vmem:[#allocation2] sm:$0x3]
    %v101 = vpack.c.bf16 %v100, %v100
    %v102 = vld [vmem:[#allocation6] sm:$0xff]
    %v103 = vld [vmem:[#allocation6 + $0x8] sm:$0xff]
    %v104 = vld [vmem:[#allocation6 + $0x10] sm:$0xff]
    %v105 = vld [vmem:[#allocation6 + $0x18] sm:$0xff]
    %v106 = vld [vmem:[#allocation6 + $0x20] sm:$0xff]
    %v107 = vld [vmem:[#allocation6 + $0x28] sm:$0xff]
    %v108 = vld [vmem:[#allocation6 + $0x30] sm:$0xff]
    %v109 = vld [vmem:[#allocation6 + $0x38] sm:$0xff]
    %v110 = vld [vmem:[%s3] sm:$0xf]
    %v112 = vlaneseq
    %v113 = vshrl.u32 %v112, 7
    %v114 = vsub.s32 0, %v113
    %v115 = vrot.slane %v110, %v114
    %v116 = vlaneseq
    %v117 = vshrl.u32 %v116, 7
    %v118 = vsub.s32 1, %v117
    %v119 = vrot.slane %v110, %v118
    %v120 = vlaneseq
    %v121 = vshrl.u32 %v120, 7
    %v122 = vsub.s32 2, %v121
    %v123 = vrot.slane %v110, %v122
    %v124 = vlaneseq
    %v125 = vshrl.u32 %v124, 7
    %v126 = vsub.s32 3, %v125
    %v127 = vrot.slane %v110, %v126
    %v140 = vunpack.c.l.b16 %v102
    %v141 = vunpack.c.h.b16 %v102
    %v142 = vunpack.c.l.b16 %v103
    %v143 = vunpack.c.h.b16 %v103
    %v144 = vunpack.c.l.b16 %v104
    %v145 = vunpack.c.h.b16 %v104
    %v146 = vunpack.c.l.b16 %v105
    %v147 = vunpack.c.h.b16 %v105
    %v148 = vunpack.c.l.b16 %v106
    %v149 = vunpack.c.h.b16 %v106
    %v150 = vunpack.c.l.b16 %v107
    %v151 = vunpack.c.h.b16 %v107
    %v152 = vunpack.c.l.b16 %v108
    %v153 = vunpack.c.h.b16 %v108
    %v154 = vunpack.c.l.b16 %v109
    %v155 = vunpack.c.h.b16 %v109
    %v156 = vpack.c.b16 %v144, %v140
    %v157 = vpack.c.b16 %v145, %v141
    %v158 = vpack.c.b16 %v146, %v142
    %v159 = vpack.c.b16 %v147, %v143
    %v160 = vpack.c.b16 %v152, %v148
    %v161 = vpack.c.b16 %v153, %v149
    %v162 = vpack.c.b16 %v154, %v150
    %v163 = vpack.c.b16 %v155, %v151
    %vm168 = vcmask 252928
    %v170 = vsel %vm168, %v101, 0
    %vm172 = vcmask 1046528
    %vm173 = vcmask 1047552
    %v174 = vsel %vm172, 4294967295, 65535
    %v175 = vsel %vm173, %v174, 0
    %v177 = vand.u32 %v160, %v175
    %v180 = vand.u32 %v161, %v175
    %v183 = vand.u32 %v162, %v175
    %v186 = vand.u32 %v163, %v175
    %188 = vmatprep.subr.bf16.mxu0 %v157
    %189 = vmatpush1.bf16.msra.mxu0 %v156
    %190 = vmatprep.subr.bf16.mxu0 %v180
    %191 = vmatpush1.bf16.msra.mxu0 %v177
    %192 = vmatprep.subr.bf16.mxu0 0
    %193 = vmatpush1.bf16.msra.mxu0 0
    %194 = vmatprep.subr.bf16.mxu0 0
    %195 = vmatpush1.bf16.msra.mxu0 0
    %196 = vmatprep.subr.bf16.mxu0 0
    %197 = vmatpush1.bf16.msra.mxu0 0
    %198 = vmatprep.subr.bf16.mxu0 0
    %199 = vmatpush1.bf16.msra.mxu0 0
    %200 = vmatprep.subr.bf16.mxu0 0
    %201 = vmatpush1.bf16.msra.mxu0 0
    %202 = vmatprep.subr.bf16.mxu0 0
    %203 = vmatpush1.bf16.msra.mxu0 0
    %204 = vmatprep.subr.bf16.mxu0 0
    %205 = vmatpush1.bf16.msra.mxu0 0
    %206 = vmatprep.subr.bf16.mxu0 0
    %207 = vmatpush1.bf16.msra.mxu0 0
    %208 = vmatprep.subr.bf16.mxu0 0
    %209 = vmatpush1.bf16.msra.mxu0 0
    %210 = vmatprep.subr.bf16.mxu0 0
    %211 = vmatpush1.bf16.msra.mxu0 0
    %212 = vmatprep.subr.bf16.mxu0 0
    %213 = vmatpush1.bf16.msra.mxu0 0
    %214 = vmatprep.subr.bf16.mxu0 0
    %215 = vmatpush1.bf16.msra.mxu0 0
    %216 = vmatprep.subr.bf16.mxu0 0
    %217 = vmatpush1.bf16.msra.mxu0 0
    %218 = vmatprep.subr.bf16.mxu0 0
    %219 = vmatpush1.bf16.msra.mxu0 0
    %220 = vmatprep.mubr.bf16.mxu0 0
    %221 = vmatmul.mubr.bf16.gmra.mrb[0].mxu0 %v170
    %v222 = vpop.f32.mrb[0].mxu0
    %v223 = vadd.f32 %v115, %v222
    %v224 = vpop.f32.mrb[0].mxu0
    %v225 = vadd.f32 %v119, %v224
    %v226 = vpop.f32.mrb[0].mxu0
    %v227 = vpop.f32.mrb[0].mxu0
    %228 = vdwg.mxu0
    %229 = vmatprep.subr.bf16.mxu0 %v159
    %230 = vmatpush1.bf16.msra.mxu0 %v158
    %231 = vmatprep.subr.bf16.mxu0 %v186
    %232 = vmatpush1.bf16.msra.mxu0 %v183
    %233 = vmatprep.subr.bf16.mxu0 0
    %234 = vmatpush1.bf16.msra.mxu0 0
    %235 = vmatprep.subr.bf16.mxu0 0
    %236 = vmatpush1.bf16.msra.mxu0 0
    %237 = vmatprep.subr.bf16.mxu0 0
    %238 = vmatpush1.bf16.msra.mxu0 0
    %239 = vmatprep.subr.bf16.mxu0 0
    %240 = vmatpush1.bf16.msra.mxu0 0
    %241 = vmatprep.subr.bf16.mxu0 0
    %242 = vmatpush1.bf16.msra.mxu0 0
    %243 = vmatprep.subr.bf16.mxu0 0
    %244 = vmatpush1.bf16.msra.mxu0 0
    %245 = vmatprep.subr.bf16.mxu0 0
    %246 = vmatpush1.bf16.msra.mxu0 0
    %247 = vmatprep.subr.bf16.mxu0 0
    %248 = vmatpush1.bf16.msra.mxu0 0
    %249 = vmatprep.subr.bf16.mxu0 0
    %250 = vmatpush1.bf16.msra.mxu0 0
    %251 = vmatprep.subr.bf16.mxu0 0
    %252 = vmatpush1.bf16.msra.mxu0 0
    %253 = vmatprep.subr.bf16.mxu0 0
    %254 = vmatpush1.bf16.msra.mxu0 0
    %255 = vmatprep.subr.bf16.mxu0 0
    %256 = vmatpush1.bf16.msra.mxu0 0
    %257 = vmatprep.subr.bf16.mxu0 0
    %258 = vmatpush1.bf16.msra.mxu0 0
    %259 = vmatprep.subr.bf16.mxu0 0
    %260 = vmatpush1.bf16.msra.mxu0 0
    %261 = vmatprep.mubr.bf16.mxu0 0
    %262 = vmatmul.mubr.bf16.gmra.mrb[0].mxu0 %v170
    %v263 = vpop.f32.mrb[0].mxu0
    %v264 = vadd.f32 %v123, %v263
    %v265 = vpop.f32.mrb[0].mxu0
    %v266 = vadd.f32 %v127, %v265
    %v267 = vpop.f32.mrb[0].mxu0
    %v268 = vpop.f32.mrb[0].mxu0
    %269 = vdwg.mxu0
    %v270 = vmax.f32 %v223, 0.0
    %v271 = vmax.f32 %v225, 0.0
    %v272 = vmax.f32 %v264, 0.0
    %v273 = vmax.f32 %v266, 0.0
    %v274 = vpack.c.bf16 %v270, %v270
    %v275 = vpack.c.bf16 %v271, %v271
    %v276 = vld [vmem:[#allocation8] sm:$0xff]
    %v277 = vld [vmem:[#allocation8 + $0x8] sm:$0xff]
    %v278 = vld [vmem:[#allocation8 + $0x10] sm:$0xff]
    %v279 = vld [vmem:[#allocation8 + $0x18] sm:$0xff]
    %v280 = vld [vmem:[#allocation8 + $0x20] sm:$0xff]
    %v281 = vld [vmem:[#allocation8 + $0x28] sm:$0xff]
    %v282 = vld [vmem:[#allocation8 + $0x30] sm:$0xff]
    %v283 = vld [vmem:[#allocation8 + $0x38] sm:$0xff]
    %v284 = vld [vmem:[#allocation8 + $0x40] sm:$0xff]
    %v285 = vld [vmem:[#allocation8 + $0x48] sm:$0xff]
    %v286 = vld [vmem:[#allocation8 + $0x50] sm:$0xff]
    %v287 = vld [vmem:[#allocation8 + $0x58] sm:$0xff]
    %v288 = vld [vmem:[#allocation8 + $0x60] sm:$0xff]
    %v289 = vld [vmem:[#allocation8 + $0x68] sm:$0xff]
    %v290 = vld [vmem:[#allocation8 + $0x70] sm:$0xff]
    %v291 = vld [vmem:[#allocation8 + $0x78] sm:$0xff]
    %v292 = vld [vmem:[#allocation8 + $0x80] sm:$0xff]
    %v293 = vld [vmem:[#allocation8 + $0x88] sm:$0xff]
    %v294 = vld [vmem:[#allocation8 + $0x90] sm:$0xff]
    %v295 = vld [vmem:[#allocation8 + $0x98] sm:$0xff]
    %v296 = vld [vmem:[#allocation8 + $0xa0] sm:$0xff]
    %v297 = vld [vmem:[#allocation8 + $0xa8] sm:$0xff]
    %v298 = vld [vmem:[#allocation8 + $0xb0] sm:$0xff]
    %v299 = vld [vmem:[#allocation8 + $0xb8] sm:$0xff]
    %v300 = vld [vmem:[#allocation8 + $0xc0] sm:$0xff]
    %v301 = vld [vmem:[#allocation8 + $0xc8] sm:$0xff]
    %v302 = vld [vmem:[#allocation8 + $0xd0] sm:$0xff]
    %v303 = vld [vmem:[#allocation8 + $0xd8] sm:$0xff]
    %v304 = vld [vmem:[#allocation8 + $0xe0] sm:$0xff]
    %v305 = vld [vmem:[#allocation8 + $0xe8] sm:$0xff]
    %v306 = vld [vmem:[#allocation8 + $0xf0] sm:$0xff]
    %v307 = vld [vmem:[#allocation8 + $0xf8] sm:$0xff]
    %v308 = vld [vmem:[%s5] sm:$0x3]
    %v310 = vlaneseq
    %v311 = vshrl.u32 %v310, 7
    %v312 = vsub.s32 0, %v311
    %v313 = vrot.slane %v308, %v312
    %v314 = vlaneseq
    %v315 = vshrl.u32 %v314, 7
    %v316 = vsub.s32 1, %v315
    %v317 = vrot.slane %v308, %v316
    %v352 = vunpack.c.l.b16 %v276
    %v353 = vunpack.c.h.b16 %v276
    %v354 = vunpack.c.l.b16 %v277
    %v355 = vunpack.c.h.b16 %v277
    %v356 = vunpack.c.l.b16 %v278
    %v357 = vunpack.c.h.b16 %v278
    %v358 = vunpack.c.l.b16 %v279
    %v359 = vunpack.c.h.b16 %v279
    %v360 = vunpack.c.l.b16 %v280
    %v361 = vunpack.c.h.b16 %v280
    %v362 = vunpack.c.l.b16 %v281
    %v363 = vunpack.c.h.b16 %v281
    %v364 = vunpack.c.l.b16 %v282
    %v365 = vunpack.c.h.b16 %v282
    %v366 = vunpack.c.l.b16 %v283
    %v367 = vunpack.c.h.b16 %v283
    %v368 = vunpack.c.l.b16 %v284
    %v369 = vunpack.c.h.b16 %v284
    %v370 = vunpack.c.l.b16 %v285
    %v371 = vunpack.c.h.b16 %v285
    %v372 = vunpack.c.l.b16 %v286
    %v373 = vunpack.c.h.b16 %v286
    %v374 = vunpack.c.l.b16 %v287
    %v375 = vunpack.c.h.b16 %v287
    %v376 = vunpack.c.l.b16 %v288
    %v377 = vunpack.c.h.b16 %v288
    %v378 = vunpack.c.l.b16 %v289
    %v379 = vunpack.c.h.b16 %v289
    %v380 = vunpack.c.l.b16 %v290
    %v381 = vunpack.c.h.b16 %v290
    %v382 = vunpack.c.l.b16 %v291
    %v383 = vunpack.c.h.b16 %v291
    %v384 = vunpack.c.l.b16 %v292
    %v385 = vunpack.c.h.b16 %v292
    %v386 = vunpack.c.l.b16 %v293
    %v387 = vunpack.c.h.b16 %v293
    %v388 = vunpack.c.l.b16 %v294
    %v389 = vunpack.c.h.b16 %v294
    %v390 = vunpack.c.l.b16 %v295
    %v391 = vunpack.c.h.b16 %v295
    %v392 = vunpack.c.l.b16 %v296
    %v393 = vunpack.c.h.b16 %v296
    %v394 = vunpack.c.l.b16 %v297
    %v395 = vunpack.c.h.b16 %v297
    %v396 = vunpack.c.l.b16 %v298
    %v397 = vunpack.c.h.b16 %v298
    %v398 = vunpack.c.l.b16 %v299
    %v399 = vunpack.c.h.b16 %v299
    %v400 = vunpack.c.l.b16 %v300
    %v401 = vunpack.c.h.b16 %v300
    %v402 = vunpack.c.l.b16 %v301
    %v403 = vunpack.c.h.b16 %v301
    %v404 = vunpack.c.l.b16 %v302
    %v405 = vunpack.c.h.b16 %v302
    %v406 = vunpack.c.l.b16 %v303
    %v407 = vunpack.c.h.b16 %v303
    %v408 = vunpack.c.l.b16 %v304
    %v409 = vunpack.c.h.b16 %v304
    %v410 = vunpack.c.l.b16 %v305
    %v411 = vunpack.c.h.b16 %v305
    %v412 = vunpack.c.l.b16 %v306
    %v413 = vunpack.c.h.b16 %v306
    %v414 = vunpack.c.l.b16 %v307
    %v415 = vunpack.c.h.b16 %v307
    %v416 = vpack.c.b16 %v354, %v352
    %v417 = vpack.c.b16 %v355, %v353
    %v418 = vpack.c.b16 %v358, %v356
    %v419 = vpack.c.b16 %v359, %v357
    %v420 = vpack.c.b16 %v362, %v360
    %v421 = vpack.c.b16 %v363, %v361
    %v422 = vpack.c.b16 %v366, %v364
    %v423 = vpack.c.b16 %v367, %v365
    %v424 = vpack.c.b16 %v370, %v368
    %v425 = vpack.c.b16 %v371, %v369
    %v426 = vpack.c.b16 %v374, %v372
    %v427 = vpack.c.b16 %v375, %v373
    %v428 = vpack.c.b16 %v378, %v376
    %v429 = vpack.c.b16 %v379, %v377
    %v430 = vpack.c.b16 %v382, %v380
    %v431 = vpack.c.b16 %v383, %v381
    %v432 = vpack.c.b16 %v386, %v384
    %v433 = vpack.c.b16 %v387, %v385
    %v434 = vpack.c.b16 %v390, %v388
    %v435 = vpack.c.b16 %v391, %v389
    %v436 = vpack.c.b16 %v394, %v392
    %v437 = vpack.c.b16 %v395, %v393
    %v438 = vpack.c.b16 %v398, %v396
    %v439 = vpack.c.b16 %v399, %v397
    %v440 = vpack.c.b16 %v402, %v400
    %v441 = vpack.c.b16 %v403, %v401
    %v442 = vpack.c.b16 %v406, %v404
    %v443 = vpack.c.b16 %v407, %v405
    %v444 = vpack.c.b16 %v410, %v408
    %v445 = vpack.c.b16 %v411, %v409
    %v446 = vpack.c.b16 %v414, %v412
    %v447 = vpack.c.b16 %v415, %v413
    %480 = vmatprep.subr.bf16.mxu0 %v417
    %481 = vmatpush1.bf16.msra.mxu0 %v416
    %482 = vmatprep.subr.bf16.mxu0 %v419
    %483 = vmatpush1.bf16.msra.mxu0 %v418
    %484 = vmatprep.subr.bf16.mxu0 %v421
    %485 = vmatpush1.bf16.msra.mxu0 %v420
    %486 = vmatprep.subr.bf16.mxu0 %v423
    %487 = vmatpush1.bf16.msra.mxu0 %v422
    %488 = vmatprep.subr.bf16.mxu0 %v425
    %489 = vmatpush1.bf16.msra.mxu0 %v424
    %490 = vmatprep.subr.bf16.mxu0 %v427
    %491 = vmatpush1.bf16.msra.mxu0 %v426
    %492 = vmatprep.subr.bf16.mxu0 %v429
    %493 = vmatpush1.bf16.msra.mxu0 %v428
    %494 = vmatprep.subr.bf16.mxu0 %v431
    %495 = vmatpush1.bf16.msra.mxu0 %v430
    %496 = vmatprep.subr.bf16.mxu0 %v433
    %497 = vmatpush1.bf16.msra.mxu0 %v432
    %498 = vmatprep.subr.bf16.mxu0 %v435
    %499 = vmatpush1.bf16.msra.mxu0 %v434
    %500 = vmatprep.subr.bf16.mxu0 %v437
    %501 = vmatpush1.bf16.msra.mxu0 %v436
    %502 = vmatprep.subr.bf16.mxu0 %v439
    %503 = vmatpush1.bf16.msra.mxu0 %v438
    %504 = vmatprep.subr.bf16.mxu0 %v441
    %505 = vmatpush1.bf16.msra.mxu0 %v440
    %506 = vmatprep.subr.bf16.mxu0 %v443
    %507 = vmatpush1.bf16.msra.mxu0 %v442
    %508 = vmatprep.subr.bf16.mxu0 %v445
    %509 = vmatpush1.bf16.msra.mxu0 %v444
    %510 = vmatprep.subr.bf16.mxu0 %v447
    %511 = vmatpush1.bf16.msra.mxu0 %v446
    %512 = vmatprep.mubr.bf16.mxu0 %v275
    %513 = vmatmul.mubr.bf16.gmra.mrb[0].mxu0 %v274
    %v514 = vpop.f32.mrb[0].mxu0
    %v515 = vadd.f32 %v313, %v514
    %v516 = vpop.f32.mrb[0].mxu0
    %v517 = vadd.f32 %v317, %v516
    %v518 = vpop.f32.mrb[0].mxu0
    %v519 = vpop.f32.mrb[0].mxu0
    %520 = vdwg.mxu0
    %v521 = vmax.f32 %v515, 0.0
    %v522 = vmax.f32 %v517, 0.0
    %v523 = vpack.c.bf16 %v272, %v272
    %v524 = vpack.c.bf16 %v273, %v273
    %v525 = vld [vmem:[#allocation9] sm:$0xff]
    %v526 = vld [vmem:[#allocation9 + $0x8] sm:$0xff]
    %v527 = vld [vmem:[#allocation9 + $0x10] sm:$0xff]
    %v528 = vld [vmem:[#allocation9 + $0x18] sm:$0xff]
    %v529 = vld [vmem:[#allocation9 + $0x20] sm:$0xff]
    %v530 = vld [vmem:[#allocation9 + $0x28] sm:$0xff]
    %v531 = vld [vmem:[#allocation9 + $0x30] sm:$0xff]
    %v532 = vld [vmem:[#allocation9 + $0x38] sm:$0xff]
    %v533 = vld [vmem:[#allocation9 + $0x40] sm:$0xff]
    %v534 = vld [vmem:[#allocation9 + $0x48] sm:$0xff]
    %v535 = vld [vmem:[#allocation9 + $0x50] sm:$0xff]
    %v536 = vld [vmem:[#allocation9 + $0x58] sm:$0xff]
    %v537 = vld [vmem:[#allocation9 + $0x60] sm:$0xff]
    %v538 = vld [vmem:[#allocation9 + $0x68] sm:$0xff]
    %v539 = vld [vmem:[#allocation9 + $0x70] sm:$0xff]
    %v540 = vld [vmem:[#allocation9 + $0x78] sm:$0xff]
    %v541 = vld [vmem:[#allocation9 + $0x80] sm:$0xff]
    %v542 = vld [vmem:[#allocation9 + $0x88] sm:$0xff]
    %v543 = vld [vmem:[#allocation9 + $0x90] sm:$0xff]
    %v544 = vld [vmem:[#allocation9 + $0x98] sm:$0xff]
    %v545 = vld [vmem:[#allocation9 + $0xa0] sm:$0xff]
    %v546 = vld [vmem:[#allocation9 + $0xa8] sm:$0xff]
    %v547 = vld [vmem:[#allocation9 + $0xb0] sm:$0xff]
    %v548 = vld [vmem:[#allocation9 + $0xb8] sm:$0xff]
    %v549 = vld [vmem:[#allocation9 + $0xc0] sm:$0xff]
    %v550 = vld [vmem:[#allocation9 + $0xc8] sm:$0xff]
    %v551 = vld [vmem:[#allocation9 + $0xd0] sm:$0xff]
    %v552 = vld [vmem:[#allocation9 + $0xd8] sm:$0xff]
    %v553 = vld [vmem:[#allocation9 + $0xe0] sm:$0xff]
    %v554 = vld [vmem:[#allocation9 + $0xe8] sm:$0xff]
    %v555 = vld [vmem:[#allocation9 + $0xf0] sm:$0xff]
    %v556 = vld [vmem:[#allocation9 + $0xf8] sm:$0xff]
    %v557 = vld [vmem:[%s7] sm:$0x3]
    %v559 = vlaneseq
    %v560 = vshrl.u32 %v559, 7
    %v561 = vsub.s32 0, %v560
    %v562 = vrot.slane %v557, %v561
    %v563 = vlaneseq
    %v564 = vshrl.u32 %v563, 7
    %v565 = vsub.s32 1, %v564
    %v566 = vrot.slane %v557, %v565
    %v601 = vunpack.c.l.b16 %v525
    %v602 = vunpack.c.h.b16 %v525
    %v603 = vunpack.c.l.b16 %v526
    %v604 = vunpack.c.h.b16 %v526
    %v605 = vunpack.c.l.b16 %v527
    %v606 = vunpack.c.h.b16 %v527
    %v607 = vunpack.c.l.b16 %v528
    %v608 = vunpack.c.h.b16 %v528
    %v609 = vunpack.c.l.b16 %v529
    %v610 = vunpack.c.h.b16 %v529
    %v611 = vunpack.c.l.b16 %v530
    %v612 = vunpack.c.h.b16 %v530
    %v613 = vunpack.c.l.b16 %v531
    %v614 = vunpack.c.h.b16 %v531
    %v615 = vunpack.c.l.b16 %v532
    %v616 = vunpack.c.h.b16 %v532
    %v617 = vunpack.c.l.b16 %v533
    %v618 = vunpack.c.h.b16 %v533
    %v619 = vunpack.c.l.b16 %v534
    %v620 = vunpack.c.h.b16 %v534
    %v621 = vunpack.c.l.b16 %v535
    %v622 = vunpack.c.h.b16 %v535
    %v623 = vunpack.c.l.b16 %v536
    %v624 = vunpack.c.h.b16 %v536
    %v625 = vunpack.c.l.b16 %v537
    %v626 = vunpack.c.h.b16 %v537
    %v627 = vunpack.c.l.b16 %v538
    %v628 = vunpack.c.h.b16 %v538
    %v629 = vunpack.c.l.b16 %v539
    %v630 = vunpack.c.h.b16 %v539
    %v631 = vunpack.c.l.b16 %v540
    %v632 = vunpack.c.h.b16 %v540
    %v633 = vunpack.c.l.b16 %v541
    %v634 = vunpack.c.h.b16 %v541
    %v635 = vunpack.c.l.b16 %v542
    %v636 = vunpack.c.h.b16 %v542
    %v637 = vunpack.c.l.b16 %v543
    %v638 = vunpack.c.h.b16 %v543
    %v639 = vunpack.c.l.b16 %v544
    %v640 = vunpack.c.h.b16 %v544
    %v641 = vunpack.c.l.b16 %v545
    %v642 = vunpack.c.h.b16 %v545
    %v643 = vunpack.c.l.b16 %v546
    %v644 = vunpack.c.h.b16 %v546
    %v645 = vunpack.c.l.b16 %v547
    %v646 = vunpack.c.h.b16 %v547
    %v647 = vunpack.c.l.b16 %v548
    %v648 = vunpack.c.h.b16 %v548
    %v649 = vunpack.c.l.b16 %v549
    %v650 = vunpack.c.h.b16 %v549
    %v651 = vunpack.c.l.b16 %v550
    %v652 = vunpack.c.h.b16 %v550
    %v653 = vunpack.c.l.b16 %v551
    %v654 = vunpack.c.h.b16 %v551
    %v655 = vunpack.c.l.b16 %v552
    %v656 = vunpack.c.h.b16 %v552
    %v657 = vunpack.c.l.b16 %v553
    %v658 = vunpack.c.h.b16 %v553
    %v659 = vunpack.c.l.b16 %v554
    %v660 = vunpack.c.h.b16 %v554
    %v661 = vunpack.c.l.b16 %v555
    %v662 = vunpack.c.h.b16 %v555
    %v663 = vunpack.c.l.b16 %v556
    %v664 = vunpack.c.h.b16 %v556
    %v665 = vpack.c.b16 %v603, %v601
    %v666 = vpack.c.b16 %v604, %v602
    %v667 = vpack.c.b16 %v607, %v605
    %v668 = vpack.c.b16 %v608, %v606
    %v669 = vpack.c.b16 %v611, %v609
    %v670 = vpack.c.b16 %v612, %v610
    %v671 = vpack.c.b16 %v615, %v613
    %v672 = vpack.c.b16 %v616, %v614
    %v673 = vpack.c.b16 %v619, %v617
    %v674 = vpack.c.b16 %v620, %v618
    %v675 = vpack.c.b16 %v623, %v621
    %v676 = vpack.c.b16 %v624, %v622
    %v677 = vpack.c.b16 %v627, %v625
    %v678 = vpack.c.b16 %v628, %v626
    %v679 = vpack.c.b16 %v631, %v629
    %v680 = vpack.c.b16 %v632, %v630
    %v681 = vpack.c.b16 %v635, %v633
    %v682 = vpack.c.b16 %v636, %v634
    %v683 = vpack.c.b16 %v639, %v637
    %v684 = vpack.c.b16 %v640, %v638
    %v685 = vpack.c.b16 %v643, %v641
    %v686 = vpack.c.b16 %v644, %v642
    %v687 = vpack.c.b16 %v647, %v645
    %v688 = vpack.c.b16 %v648, %v646
    %v689 = vpack.c.b16 %v651, %v649
    %v690 = vpack.c.b16 %v652, %v650
    %v691 = vpack.c.b16 %v655, %v653
    %v692 = vpack.c.b16 %v656, %v654
    %v693 = vpack.c.b16 %v659, %v657
    %v694 = vpack.c.b16 %v660, %v658
    %v695 = vpack.c.b16 %v663, %v661
    %v696 = vpack.c.b16 %v664, %v662
    %729 = vmatprep.subr.bf16.mxu0 %v666
    %730 = vmatpush1.bf16.msra.mxu0 %v665
    %731 = vmatprep.subr.bf16.mxu0 %v668
    %732 = vmatpush1.bf16.msra.mxu0 %v667
    %733 = vmatprep.subr.bf16.mxu0 %v670
    %734 = vmatpush1.bf16.msra.mxu0 %v669
    %735 = vmatprep.subr.bf16.mxu0 %v672
    %736 = vmatpush1.bf16.msra.mxu0 %v671
    %737 = vmatprep.subr.bf16.mxu0 %v674
    %738 = vmatpush1.bf16.msra.mxu0 %v673
    %739 = vmatprep.subr.bf16.mxu0 %v676
    %740 = vmatpush1.bf16.msra.mxu0 %v675
    %741 = vmatprep.subr.bf16.mxu0 %v678
    %742 = vmatpush1.bf16.msra.mxu0 %v677
    %743 = vmatprep.subr.bf16.mxu0 %v680
    %744 = vmatpush1.bf16.msra.mxu0 %v679
    %745 = vmatprep.subr.bf16.mxu0 %v682
    %746 = vmatpush1.bf16.msra.mxu0 %v681
    %747 = vmatprep.subr.bf16.mxu0 %v684
    %748 = vmatpush1.bf16.msra.mxu0 %v683
    %749 = vmatprep.subr.bf16.mxu0 %v686
    %750 = vmatpush1.bf16.msra.mxu0 %v685
    %751 = vmatprep.subr.bf16.mxu0 %v688
    %752 = vmatpush1.bf16.msra.mxu0 %v687
    %753 = vmatprep.subr.bf16.mxu0 %v690
    %754 = vmatpush1.bf16.msra.mxu0 %v689
    %755 = vmatprep.subr.bf16.mxu0 %v692
    %756 = vmatpush1.bf16.msra.mxu0 %v691
    %757 = vmatprep.subr.bf16.mxu0 %v694
    %758 = vmatpush1.bf16.msra.mxu0 %v693
    %759 = vmatprep.subr.bf16.mxu0 %v696
    %760 = vmatpush1.bf16.msra.mxu0 %v695
    %761 = vmatprep.mubr.bf16.mxu0 %v524
    %762 = vmatmul.mubr.bf16.gmra.mrb[0].mxu0 %v523
    %v763 = vpop.f32.mrb[0].mxu0
    %v764 = vadd.f32 %v562, %v763
    %v765 = vpop.f32.mrb[0].mxu0
    %v766 = vadd.f32 %v566, %v765
    %v767 = vpop.f32.mrb[0].mxu0
    %v768 = vpop.f32.mrb[0].mxu0
    %769 = vdwg.mxu0
    %v770 = vmax.f32 %v764, 0.0
    %v771 = vmax.f32 %v766, 0.0
    %v772 = vld [vmem:[%s8] ss:$2 sm:$0x3]
    %s773 = scalar_lea.vmem %s8, 1
    %v774 = vld [vmem:[%s773] ss:$2 sm:$0x3]
    %v776 = vlaneseq
    %v777 = vshrl.u32 %v776, 7
    %v778 = vsub.s32 0, %v777
    %v779 = vrot.slane %v772, %v778
    %v780 = vlaneseq
    %v781 = vshrl.u32 %v780, 7
    %v782 = vsub.s32 1, %v781
    %v783 = vrot.slane %v772, %v782
    %v786 = vmul.f32 %v521, %v779
    %v787 = vmul.f32 %v522, %v783
    %vm788 = vcmask 1041408
    %v789 = vsel %vm788, %v786, 0.0
    %v790 = vsel %vm788, %v787, 0.0
    %v791 = vadd.f32 %v789, %v790
    %792 = vadd.xlane.f32.xlu0 %v791
    %v793 = vpop.xlane.xlu0 %792
    %v795 = vlaneseq
    %v796 = vshrl.u32 %v795, 7
    %v797 = vsub.s32 0, %v796
    %v798 = vrot.slane %v774, %v797
    %v799 = vlaneseq
    %v800 = vshrl.u32 %v799, 7
    %v801 = vsub.s32 1, %v800
    %v802 = vrot.slane %v774, %v801
    %v805 = vmul.f32 %v770, %v798
    %v806 = vmul.f32 %v771, %v802
    %v807 = vsel %vm788, %v805, 0.0
    %v808 = vsel %vm788, %v806, 0.0
    %v809 = vadd.f32 %v807, %v808
    %810 = vadd.xlane.f32.xlu0 %v809
    %v811 = vpop.xlane.xlu0 %810
    %v812 = vlaneseq
    %v813 = vand.u32 %v812, 127
    %vm814 = vcmp.eq.s32.totalorder %v813, 0
    %v815 = vsel %vm814, %v793, %v811
    %v816 = vld [vmem:[%s9] sm:$0x1]
    %v818 = vlaneseq
    %v819 = vshrl.u32 %v818, 7
    %v820 = vsub.s32 0, %v819
    %v821 = vrot.slane %v816, %v820
    %v823 = vadd.f32 %v815, %v821
    %vm824 = vcmask 9216
    %825 = vst.msk [vmem:[#allocation11] sm:$0x3] %vm824, %v823
    // Predicated region
    $region58: #{tpu_custom_call.1} parent=1 // pred_check
      _
    $region59: #{tpu_custom_call.1} parent=1 // pred_check_branch
      %827 = sbr.rel (0) target = $region61
    $region60: #{tpu_custom_call.1} parent=1 // pred_region
      %s829 = ssub.s32 32, 32
      %830 = vsyncadd [#allocation5], %s829
      %s832 = sshll.u32 [#allocation11], 4
      %s833 = int_to_ptr.vmem [resolvable:$true] %s832
      %835 = dma.vmem_to_hbm [thread:$0]  %s833, 32, %s10, [#allocation5]
    $region61: #{tpu_custom_call.1} parent=1 // pred_fallthru
      _
    // Predicated region
    $region62: #{tpu_custom_call.1} parent=1 // pred_check
      _
    $region63: #{tpu_custom_call.1} parent=1 // pred_check_branch
      %837 = sbr.rel (0) target = $region65
    $region64: #{tpu_custom_call.1} parent=1 // pred_region
      %838 = dma.done [#allocation5], 32
    $region65: #{tpu_custom_call.1} parent=1 // pred_fallthru
      _
    %839 = vsyncpa [#allocation4], 1
    %840 = vsyncpa [#allocation7], 1
    %841 = vsyncpa [#allocation10], 1
    %842 = vsyncpa [#allocation5], 1

</llo_original>
